<compile_context>
chip_gen: v7x
topology: tpu7x:2x2x1
jax: 0.10.0
libtpu: 0.0.40
codegen_flags: <defaults>
</compile_context>

<pallas_src>
import jax
import jax.numpy as jnp
from jax.experimental import pallas as pl
from jax.experimental.pallas import tpu as pltpu

LANE = 128       # TPU lane width (last-dim alignment)
ROW_TILE = 16    # batch-tile granularity (multiple of 8 sublanes; 16 keeps
                 # the bf16 output block pack-aligned)


def _round_up(n, m):
    return ((n + m - 1) // m) * m


def _cdiv(a, b):
    return (a + b - 1) // b


def fcnet_kernel(x_ref, w1_ref, b1_ref, w2_ref, b2_ref, o_ref):
    # x_ref : (TB, D_in)       f32  (feature dim left unpadded; K=39 is legal)
    # w1_ref: (D_in, D_hid_p)  f32     b1_ref: (1, D_hid_p) f32
    # w2_ref: (D_hid_p, C_p)   f32     b2_ref: (1, C_p)     f32
    # o_ref : (TB, C_p)        bf16 (lane-dense 128-wide store)
    h = jnp.dot(x_ref[...], w1_ref[...], preferred_element_type=jnp.float32)
    h = jnp.maximum(h + b1_ref[...], 0.0)
    out = jnp.dot(h, w2_ref[...], preferred_element_type=jnp.float32)
    o_ref[...] = (out + b2_ref[...]).astype(o_ref.dtype)


def fcnet_forward(x, w1, b1, w2, b2, *, max_block_batch=4096):
    """x: (B, channels, joints) float32. Returns (B, num_cls) float32.

    w1: (D_in, D_hid), b1: (D_hid,), w2: (D_hid, num_cls), b2: (num_cls,)
    (weights stored as (in_features, out_features) == torch weight transposed).
    """
    B = x.shape[0]
    d_in, d_hid = w1.shape
    num_cls = w2.shape[1]

    # nn.Flatten() — row-major flatten of (channels, joints).  No lane pad, no
    # dtype cast: the kernel consumes (B_pad, d_in) f32 directly.
    x_flat = x.reshape(B, -1).astype(jnp.float32)

    # Lane-pad only the small, static weight/bias tensors.
    d_hid_p = _round_up(d_hid, LANE)
    c_p = _round_up(num_cls, LANE)

    # Even-split batch tiling: enough steps to respect max_block_batch, and at
    # least 2 steps (v7x megacore) once the batch is big enough to split.
    nsteps = _cdiv(B, max_block_batch)
    if nsteps < 2 and B > ROW_TILE:
        nsteps = 2
    tb = _round_up(_cdiv(B, nsteps), ROW_TILE)
    b_pad = nsteps * tb

    if b_pad != B:
        x_in = jnp.pad(x_flat, ((0, b_pad - B), (0, 0)))
    else:
        x_in = x_flat

    # Weights are static and tiny (~84 KiB padded); pad once, keep f32.
    w1_p = jnp.pad(w1.astype(jnp.float32),
                   ((0, 0), (0, d_hid_p - d_hid)))
    b1_p = jnp.pad(b1.astype(jnp.float32).reshape(1, d_hid),
                   ((0, 0), (0, d_hid_p - d_hid)))
    w2_p = jnp.pad(w2.astype(jnp.float32),
                   ((0, d_hid_p - d_hid), (0, c_p - num_cls)))
    b2_p = jnp.pad(b2.astype(jnp.float32).reshape(1, num_cls),
                   ((0, 0), (0, c_p - num_cls)))

    grid = (b_pad // tb,)

    out_p = pl.pallas_call(
        fcnet_kernel,
        out_shape=jax.ShapeDtypeStruct((b_pad, c_p), jnp.bfloat16),
        grid=grid,
        in_specs=[
            # Activations: one batch tile per grid step (pipelined DMA),
            # full (unpadded) feature dim as the last block dim.
            pl.BlockSpec((tb, d_in), lambda i: (i, 0)),
            # Weights / biases: constant block index -> VMEM-resident.
            pl.BlockSpec((d_in, d_hid_p), lambda i: (0, 0)),
            pl.BlockSpec((1, d_hid_p), lambda i: (0, 0)),
            pl.BlockSpec((d_hid_p, c_p), lambda i: (0, 0)),
            pl.BlockSpec((1, c_p), lambda i: (0, 0)),
        ],
        out_specs=pl.BlockSpec((tb, c_p), lambda i: (i, 0)),
        compiler_params=pltpu.CompilerParams(
            # Batch steps are independent -> shard across v7x's 2 TCs.
            dimension_semantics=("parallel",),
        ),
        cost_estimate=pl.CostEstimate(
            flops=2 * b_pad * (d_in * d_hid_p + d_hid_p * c_p),
            transcendentals=0,
            bytes_accessed=(x_in.size * 4
                            + w1_p.size * 4 + w2_p.size * 4
                            + b1_p.size * 4 + b2_p.size * 4
                            + b_pad * c_p * 2),
        ),
    )(x_in, w1_p, b1_p, w2_p, b2_p)

    # Slice away batch + lane padding outside the kernel, restore f32 view.
    return out_p[:B, :num_cls].astype(jnp.float32)


def init_fcnet_params(key, channels=3, joints=13, num_cls=4):
    """Deterministic init mirroring nn.Linear's uniform(-1/sqrt(fan_in), ...)."""
    d_in = channels * joints
    d_hid = channels * joints * 2
    k1, k2, k3, k4 = jax.random.split(key, 4)
    bound1 = 1.0 / jnp.sqrt(d_in)
    bound2 = 1.0 / jnp.sqrt(d_hid)
    w1 = jax.random.uniform(k1, (d_in, d_hid), jnp.float32, -bound1, bound1)
    b1 = jax.random.uniform(k2, (d_hid,), jnp.float32, -bound1, bound1)
    w2 = jax.random.uniform(k3, (d_hid, num_cls), jnp.float32, -bound2, bound2)
    b2 = jax.random.uniform(k4, (num_cls,), jnp.float32, -bound2, bound2)
    return w1, b1, w2, b2


if __name__ == "__main__":
    channels, joints, num_cls = 3, 13, 4
    batch = 2

    key = jax.random.PRNGKey(0)
    kx, kp = jax.random.split(key)
    x = jax.random.normal(kx, (batch, channels, joints), jnp.float32)
    w1, b1, w2, b2 = init_fcnet_params(kp, channels, joints, num_cls)

    out = fcnet_forward(x, w1, b1, w2, b2)
    out = jax.block_until_ready(out)
    assert out.shape == (batch, num_cls)

    # Reference: full-f32 PyTorch-equivalent math (kernel computes in f32 and
    # only rounds the final logits to bf16 for the HBM store).
    x_flat = x.reshape(batch, -1)
    ref_f32 = jnp.maximum(x_flat @ w1 + b1, 0.0) @ w2 + b2
    assert jnp.allclose(out, ref_f32, atol=2e-2, rtol=2e-2), (out, ref_f32)

    print("KERNEL_OK")
</pallas_src>

<mosaic_0001>
module attributes {stable_mosaic.version = 11 : i64} {
  func.func @fcnet_kernel(%arg0: i32, %arg1: memref<16x39xf32, #tpu.memory_space<vmem>>, %arg2: memref<39x128xf32, #tpu.memory_space<vmem>>, %arg3: memref<1x128xf32, #tpu.memory_space<vmem>>, %arg4: memref<128x128xf32, #tpu.memory_space<vmem>>, %arg5: memref<1x128xf32, #tpu.memory_space<vmem>>, %arg6: memref<16x128xbf16, #tpu.memory_space<vmem>>) attributes {dimension_semantics = [#tpu.dimension_semantics<parallel>], iteration_bounds = array<i64: 1>, scalar_prefetch = 0 : i64, scratch_operands = 0 : i64, tpu.core_type = #tpu.core_type<tc>, window_params = [{transform_indices = @transform_0, window_bounds = array<i64: 16, 39>}, {pipeline_mode = #tpu.pipeline_mode<synchronous>, transform_indices = @transform_1, window_bounds = array<i64: 39, 128>}, {pipeline_mode = #tpu.pipeline_mode<synchronous>, transform_indices = @transform_2, window_bounds = array<i64: 1, 128>}, {pipeline_mode = #tpu.pipeline_mode<synchronous>, transform_indices = @transform_3, window_bounds = array<i64: 128, 128>}, {pipeline_mode = #tpu.pipeline_mode<synchronous>, transform_indices = @transform_4, window_bounds = array<i64: 1, 128>}, {transform_indices = @transform_5, window_bounds = array<i64: 16, 128>}]} {
    %c0 = arith.constant 0 : index
    %c0_0 = arith.constant 0 : index
    %0 = vector.load %arg1[%c0, %c0_0] : memref<16x39xf32, #tpu.memory_space<vmem>>, vector<16x39xf32>
    %c0_1 = arith.constant 0 : index
    %c0_2 = arith.constant 0 : index
    %1 = vector.load %arg2[%c0_1, %c0_2] : memref<39x128xf32, #tpu.memory_space<vmem>>, vector<39x128xf32>
    %cst = arith.constant dense<0.000000e+00> : vector<16x128xf32>
    %2 = tpu.matmul %0, %1, %cst {dimension_numbers = #tpu.dot_dimension_numbers<[1], [0], [0], [1], [0, 0, 1, 1], [], []>} : vector<16x39xf32>, vector<39x128xf32>, vector<16x128xf32> -> vector<16x128xf32>
    %c0_3 = arith.constant 0 : index
    %c0_4 = arith.constant 0 : index
    %3 = vector.load %arg3[%c0_3, %c0_4] : memref<1x128xf32, #tpu.memory_space<vmem>>, vector<1x128xf32>
    %4 = vector.broadcast %3 : vector<1x128xf32> to vector<16x128xf32>
    %5 = arith.addf %2, %4 : vector<16x128xf32>
    %cst_5 = arith.constant 0.000000e+00 : f32
    %6 = vector.broadcast %cst_5 : f32 to vector<16x128xf32>
    %7 = arith.maximumf %5, %6 : vector<16x128xf32>
    %c0_6 = arith.constant 0 : index
    %c0_7 = arith.constant 0 : index
    %8 = vector.load %arg4[%c0_6, %c0_7] : memref<128x128xf32, #tpu.memory_space<vmem>>, vector<128x128xf32>
    %cst_8 = arith.constant dense<0.000000e+00> : vector<16x128xf32>
    %9 = tpu.matmul %7, %8, %cst_8 {dimension_numbers = #tpu.dot_dimension_numbers<[1], [0], [0], [1], [0, 0, 1, 1], [], []>} : vector<16x128xf32>, vector<128x128xf32>, vector<16x128xf32> -> vector<16x128xf32>
    %c0_9 = arith.constant 0 : index
    %c0_10 = arith.constant 0 : index
    %10 = vector.load %arg5[%c0_9, %c0_10] : memref<1x128xf32, #tpu.memory_space<vmem>>, vector<1x128xf32>
    %11 = vector.broadcast %10 : vector<1x128xf32> to vector<16x128xf32>
    %12 = arith.addf %9, %11 : vector<16x128xf32>
    %13 = arith.truncf %12 : vector<16x128xf32> to vector<16x128xbf16>
    %c0_11 = arith.constant 0 : index
    %c0_12 = arith.constant 0 : index
    %14 = vector.load %arg6[%c0_11, %c0_12] : memref<16x128xbf16, #tpu.memory_space<vmem>>, vector<16x128xbf16>
    tpu.vector_store %arg6[%c0_11, %c0_12], %13 {strides = array<i32>} : memref<16x128xbf16, #tpu.memory_space<vmem>>, vector<16x128xbf16>,
    return
  }
  func.func @transform_0(%arg0: i32) -> (i32, i32) {
    %c0_i32 = arith.constant 0 : i32
    %c0_i32_0 = arith.constant 0 : i32
    return %arg0, %c0_i32 : i32, i32
  }
  func.func @transform_1(%arg0: i32) -> (i32, i32) {
    %c0_i32 = arith.constant 0 : i32
    %c0_i32_0 = arith.constant 0 : i32
    %c0_i32_1 = arith.constant 0 : i32
    return %c0_i32, %c0_i32_0 : i32, i32
  }
  func.func @transform_2(%arg0: i32) -> (i32, i32) {
    %c0_i32 = arith.constant 0 : i32
    %c0_i32_0 = arith.constant 0 : i32
    %c0_i32_1 = arith.constant 0 : i32
    return %c0_i32, %c0_i32_0 : i32, i32
  }
  func.func @transform_3(%arg0: i32) -> (i32, i32) {
    %c0_i32 = arith.constant 0 : i32
    %c0_i32_0 = arith.constant 0 : i32
    %c0_i32_1 = arith.constant 0 : i32
    return %c0_i32, %c0_i32_0 : i32, i32
  }
  func.func @transform_4(%arg0: i32) -> (i32, i32) {
    %c0_i32 = arith.constant 0 : i32
    %c0_i32_0 = arith.constant 0 : i32
    %c0_i32_1 = arith.constant 0 : i32
    return %c0_i32, %c0_i32_0 : i32, i32
  }
  func.func @transform_5(%arg0: i32) -> (i32, i32) {
    %c0_i32 = arith.constant 0 : i32
    %c0_i32_0 = arith.constant 0 : i32
    return %arg0, %c0_i32 : i32, i32
  }
}

</mosaic_0001>

<llo_original>
// kernel: tpu_custom_call.1
$region0: #{tpu_custom_call.1}
  #allocation0 [shape = 'u32[]', space=smem, size = 0x4, offset = 0x4, fixed_abs, tag = 'smem constant byte address 0x4 - core index']
  #allocation1 [shape = 'u32[144,128]{1,0:T(1,128)}', space=vmem, size = 0x12000, scoped, tag = 'internal scratch']
  %s0 = inlined_call_operand.hbm [shape: f32[16,39], index: 0, kind: input, shape index: {}]
  %s1 = inlined_call_operand.hbm [shape: f32[39,128], index: 1, kind: input, shape index: {}]
  %s2 = inlined_call_operand.vmem [shape: f32[1,128], index: 2, kind: input, shape index: {}]
  %s3 = inlined_call_operand.hbm [shape: f32[128,128], index: 3, kind: input, shape index: {}]
  %s4 = inlined_call_operand.vmem [shape: f32[1,128], index: 4, kind: input, shape index: {}]
  %s5 = inlined_call_operand.hbm [shape: bf16[16,128], index: 5, kind: output, shape index: {}]
  %s6 = sld [smem:[#allocation0]]
  $region42: #{tpu_custom_call.1} parent=0
    _
  %s8 = ssub.s32 1, %s6
  %s9 = scalar_select 0, %s8, %s6
  $region1: #{tpu_custom_call.1} parent=0
    #allocation2 [shape = 'u8[8192]{0}', space=vmem, size = 0x2000, scoped, tag = 'input window, operand 0, single buffered']
    #allocation3 [shape = 's32[1]{0}', space=sflag, size = 0x4, scoped, tag = 'scoped memory for tpu_custom_call.1']
    #allocation4 [shape = 's32[1]{0}', space=sflag, size = 0x4, scoped, tag = 'scoped memory for tpu_custom_call.1']
    #allocation5 [shape = 'u8[20480]{0}', space=vmem, size = 0x5000, scoped, tag = 'input window, operand 1, single buffered']
    #allocation6 [shape = 's32[1]{0}', space=sflag, size = 0x4, scoped, tag = 'scoped memory for tpu_custom_call.1']
    #allocation7 [shape = 'u8[65536]{0}', space=vmem, size = 0x10000, scoped, tag = 'input window, operand 3, single buffered']
    #allocation8 [shape = 'u8[4096]{0}', space=vmem, size = 0x1000, scoped, tag = 'output window, operand 0, single buffered']
    %10 = vsyncpa [#allocation3], 0
    %11 = vsyncpa [#allocation6], 0
    %12 = vsyncpa [#allocation4], 0
    // Predicated region
    $region2: #{tpu_custom_call.1} parent=1 // pred_check
      _
    $region3: #{tpu_custom_call.1} parent=1 // pred_check_branch
      %14 = sbr.rel (0) target = $region5
    $region4: #{tpu_custom_call.1} parent=1 // pred_region
      %s16 = ssub.s32 256, 256
      %17 = vsyncadd [#allocation3], %s16
      %s18 = sshll.u32 [#allocation2], 4
      %s19 = int_to_ptr.vmem [resolvable:$true] %s18
      %24 = dma.hbm_to_vmem [thread:$0]  %s0, 256, %s19, [#allocation3], 128, 128, 8
    $region5: #{tpu_custom_call.1} parent=1 // pred_fallthru
      _
    // Predicated region
    $region6: #{tpu_custom_call.1} parent=1 // pred_check
      _
    $region7: #{tpu_custom_call.1} parent=1 // pred_check_branch
      %26 = sbr.rel (0) target = $region9
    $region8: #{tpu_custom_call.1} parent=1 // pred_region
      %s28 = ssub.s32 640, 640
      %29 = vsyncadd [#allocation6], %s28
      %s30 = sshll.u32 [#allocation5], 4
      %s31 = int_to_ptr.vmem [resolvable:$true] %s30
      %36 = dma.hbm_to_vmem [thread:$0]  %s1, 640, %s31, [#allocation6], 128, 128, 8
    $region9: #{tpu_custom_call.1} parent=1 // pred_fallthru
      _
    // Predicated region
    $region10: #{tpu_custom_call.1} parent=1 // pred_check
      _
    $region11: #{tpu_custom_call.1} parent=1 // pred_check_branch
      %38 = sbr.rel (0) target = $region13
    $region12: #{tpu_custom_call.1} parent=1 // pred_region
      _
    $region13: #{tpu_custom_call.1} parent=1 // pred_fallthru
      _
    // Predicated region
    $region14: #{tpu_custom_call.1} parent=1 // pred_check
      _
    $region15: #{tpu_custom_call.1} parent=1 // pred_check_branch
      %40 = sbr.rel (0) target = $region17
    $region16: #{tpu_custom_call.1} parent=1 // pred_region
      %s42 = ssub.s32 2048, 2048
      %43 = vsyncadd [#allocation6], %s42
      %s44 = sshll.u32 [#allocation7], 4
      %s45 = int_to_ptr.vmem [resolvable:$true] %s44
      %50 = dma.hbm_to_vmem [thread:$0]  %s3, 2048, %s45, [#allocation6], 128, 128, 8
    $region17: #{tpu_custom_call.1} parent=1 // pred_fallthru
      _
    // Predicated region
    $region18: #{tpu_custom_call.1} parent=1 // pred_check
      _
    $region19: #{tpu_custom_call.1} parent=1 // pred_check_branch
      %52 = sbr.rel (0) target = $region21
    $region20: #{tpu_custom_call.1} parent=1 // pred_region
      _
    $region21: #{tpu_custom_call.1} parent=1 // pred_fallthru
      _
    // Predicated region
    $region22: #{tpu_custom_call.1} parent=1 // pred_check
      _
    $region23: #{tpu_custom_call.1} parent=1 // pred_check_branch
      %54 = sbr.rel (0) target = $region25
    $region24: #{tpu_custom_call.1} parent=1 // pred_region
      %55 = dma.done [#allocation3], 256
    $region25: #{tpu_custom_call.1} parent=1 // pred_fallthru
      _
    // Predicated region
    $region26: #{tpu_custom_call.1} parent=1 // pred_check
      _
    $region27: #{tpu_custom_call.1} parent=1 // pred_check_branch
      %57 = sbr.rel (0) target = $region29
    $region28: #{tpu_custom_call.1} parent=1 // pred_region
      %58 = dma.done [#allocation6], 640
    $region29: #{tpu_custom_call.1} parent=1 // pred_fallthru
      _
    // Predicated region
    $region30: #{tpu_custom_call.1} parent=1 // pred_check
      _
    $region31: #{tpu_custom_call.1} parent=1 // pred_check_branch
      %60 = sbr.rel (0) target = $region33
    $region32: #{tpu_custom_call.1} parent=1 // pred_region
      %61 = dma.done [#allocation6], 2048
    $region33: #{tpu_custom_call.1} parent=1 // pred_fallthru
      _
    %v62 = vld [vmem:[#allocation2] sm:$0xff]
    %v63 = vld [vmem:[#allocation2 + $0x8] sm:$0xff]
    %v64 = vld [vmem:[#allocation5] sm:$0xff]
    %v65 = vld [vmem:[#allocation5 + $0x8] sm:$0xff]
    %v66 = vld [vmem:[#allocation5 + $0x10] sm:$0xff]
    %v67 = vld [vmem:[#allocation5 + $0x18] sm:$0xff]
    %v68 = vld [vmem:[#allocation5 + $0x20] sm:$0x7f]
    %v69 = vld [vmem:[%s2] sm:$0x1]
    %v71 = vlaneseq
    %v72 = vshrl.u32 %v71, 7
    %v73 = vsub.s32 0, %v72
    %v74 = vrot.slane %v69, %v73
    %vm76 = vcmask 318464
    %v78 = vsel %vm76, %v62, 0
    %v81 = vsel %vm76, %v63, 0
    %vm83 = vcmask 1046528
    %v85 = vsel %vm83, %v68, 0
    %87 = vmatprep.subr.mxu0 0.0
    %88 = vmatpush1.msra.mxu0 %v64
    %89 = vmatprep.subr.mxu0 0.0
    %90 = vmatpush1.msra.mxu0 %v65
    %91 = vmatprep.subr.mxu0 0.0
    %92 = vmatpush1.msra.mxu0 %v66
    %93 = vmatprep.subr.mxu0 0.0
    %94 = vmatpush1.msra.mxu0 %v67
    %95 = vmatprep.subr.mxu0 0.0
    %96 = vmatpush1.msra.mxu0 %v85
    %97 = vmatprep.subr.mxu0 0.0
    %98 = vmatpush1.msra.mxu0 0.0
    %99 = vmatprep.subr.mxu0 0.0
    %100 = vmatpush1.msra.mxu0 0.0
    %101 = vmatprep.subr.mxu0 0.0
    %102 = vmatpush1.msra.mxu0 0.0
    %103 = vmatprep.subr.mxu0 0.0
    %104 = vmatpush1.msra.mxu0 0.0
    %105 = vmatprep.subr.mxu0 0.0
    %106 = vmatpush1.msra.mxu0 0.0
    %107 = vmatprep.subr.mxu0 0.0
    %108 = vmatpush1.msra.mxu0 0.0
    %109 = vmatprep.subr.mxu0 0.0
    %110 = vmatpush1.msra.mxu0 0.0
    %111 = vmatprep.subr.mxu0 0.0
    %112 = vmatpush1.msra.mxu0 0.0
    %113 = vmatprep.subr.mxu0 0.0
    %114 = vmatpush1.msra.mxu0 0.0
    %115 = vmatprep.subr.mxu0 0.0
    %116 = vmatpush1.msra.mxu0 0.0
    %117 = vmatprep.subr.mxu0 0.0
    %118 = vmatpush1.msra.mxu0 0.0
    %119 = vmatprep.subr.mxu0 0.0
    %120 = vmatpush1.msra.mxu0 0.0
    %121 = vmatprep.subr.mxu0 0.0
    %122 = vmatpush1.msra.mxu0 0.0
    %123 = vmatprep.subr.mxu0 0.0
    %124 = vmatpush1.msra.mxu0 0.0
    %125 = vmatprep.subr.mxu0 0.0
    %126 = vmatpush1.msra.mxu0 0.0
    %127 = vmatprep.subr.mxu0 0.0
    %128 = vmatpush1.msra.mxu0 0.0
    %129 = vmatprep.subr.mxu0 0.0
    %130 = vmatpush1.msra.mxu0 0.0
    %131 = vmatprep.subr.mxu0 0.0
    %132 = vmatpush1.msra.mxu0 0.0
    %133 = vmatprep.subr.mxu0 0.0
    %134 = vmatpush1.msra.mxu0 0.0
    %135 = vmatprep.subr.mxu0 0.0
    %136 = vmatpush1.msra.mxu0 0.0
    %137 = vmatprep.subr.mxu0 0.0
    %138 = vmatpush1.msra.mxu0 0.0
    %139 = vmatprep.subr.mxu0 0.0
    %140 = vmatpush1.msra.mxu0 0.0
    %141 = vmatprep.subr.mxu0 0.0
    %142 = vmatpush1.msra.mxu0 0.0
    %143 = vmatprep.subr.mxu0 0.0
    %144 = vmatpush1.msra.mxu0 0.0
    %145 = vmatprep.subr.mxu0 0.0
    %146 = vmatpush1.msra.mxu0 0.0
    %147 = vmatprep.subr.mxu0 0.0
    %148 = vmatpush1.msra.mxu0 0.0
    %149 = vmatprep.subr.mxu0 0.0
    %150 = vmatpush1.msra.mxu0 0.0
    %151 = vmatprep.mubr.f32.mxu0 0.0
    %152 = vmatmul.mubr.f32.gmra.mrb[0].mxu0 %v78
    %v153 = vpop.f32.mrb[0].mxu0
    %v154 = vadd.f32 %v74, %v153
    %v155 = vpop.f32.mrb[0].mxu0
    %156 = vmatprep.mubr.f32.mxu0 0.0
    %157 = vmatmul.mubr.f32.gmra.mrb[0].mxu0 %v81
    %v158 = vpop.f32.mrb[0].mxu0
    %v159 = vadd.f32 %v74, %v158
    %v160 = vpop.f32.mrb[0].mxu0
    %161 = vdwg.mxu0
    %v162 = vmax.f32 %v154, 0.0
    %v163 = vmax.f32 %v159, 0.0
    %v164 = vld [vmem:[#allocation7] sm:$0xff]
    %v165 = vld [vmem:[#allocation7 + $0x8] sm:$0xff]
    %v166 = vld [vmem:[#allocation7 + $0x10] sm:$0xff]
    %v167 = vld [vmem:[#allocation7 + $0x18] sm:$0xff]
    %v168 = vld [vmem:[#allocation7 + $0x20] sm:$0xff]
    %v169 = vld [vmem:[#allocation7 + $0x28] sm:$0xff]
    %v170 = vld [vmem:[#allocation7 + $0x30] sm:$0xff]
    %v171 = vld [vmem:[#allocation7 + $0x38] sm:$0xff]
    %v172 = vld [vmem:[#allocation7 + $0x40] sm:$0xff]
    %v173 = vld [vmem:[#allocation7 + $0x48] sm:$0xff]
    %v174 = vld [vmem:[#allocation7 + $0x50] sm:$0xff]
    %v175 = vld [vmem:[#allocation7 + $0x58] sm:$0xff]
    %v176 = vld [vmem:[#allocation7 + $0x60] sm:$0xff]
    %v177 = vld [vmem:[#allocation7 + $0x68] sm:$0xff]
    %v178 = vld [vmem:[#allocation7 + $0x70] sm:$0xff]
    %v179 = vld [vmem:[#allocation7 + $0x78] sm:$0xff]
    %v180 = vld [vmem:[%s4] sm:$0x1]
    %v182 = vlaneseq
    %v183 = vshrl.u32 %v182, 7
    %v184 = vsub.s32 0, %v183
    %v185 = vrot.slane %v180, %v184
    %187 = vmatprep.subr.mxu0 0.0
    %188 = vmatpush1.msra.mxu0 %v164
    %189 = vmatprep.subr.mxu0 0.0
    %190 = vmatpush1.msra.mxu0 %v165
    %191 = vmatprep.subr.mxu0 0.0
    %192 = vmatpush1.msra.mxu0 %v166
    %193 = vmatprep.subr.mxu0 0.0
    %194 = vmatpush1.msra.mxu0 %v167
    %195 = vmatprep.subr.mxu0 0.0
    %196 = vmatpush1.msra.mxu0 %v168
    %197 = vmatprep.subr.mxu0 0.0
    %198 = vmatpush1.msra.mxu0 %v169
    %199 = vmatprep.subr.mxu0 0.0
    %200 = vmatpush1.msra.mxu0 %v170
    %201 = vmatprep.subr.mxu0 0.0
    %202 = vmatpush1.msra.mxu0 %v171
    %203 = vmatprep.subr.mxu0 0.0
    %204 = vmatpush1.msra.mxu0 %v172
    %205 = vmatprep.subr.mxu0 0.0
    %206 = vmatpush1.msra.mxu0 %v173
    %207 = vmatprep.subr.mxu0 0.0
    %208 = vmatpush1.msra.mxu0 %v174
    %209 = vmatprep.subr.mxu0 0.0
    %210 = vmatpush1.msra.mxu0 %v175
    %211 = vmatprep.subr.mxu0 0.0
    %212 = vmatpush1.msra.mxu0 %v176
    %213 = vmatprep.subr.mxu0 0.0
    %214 = vmatpush1.msra.mxu0 %v177
    %215 = vmatprep.subr.mxu0 0.0
    %216 = vmatpush1.msra.mxu0 %v178
    %217 = vmatprep.subr.mxu0 0.0
    %218 = vmatpush1.msra.mxu0 %v179
    %219 = vmatprep.subr.mxu0 0.0
    %220 = vmatpush1.msra.mxu0 0.0
    %221 = vmatprep.subr.mxu0 0.0
    %222 = vmatpush1.msra.mxu0 0.0
    %223 = vmatprep.subr.mxu0 0.0
    %224 = vmatpush1.msra.mxu0 0.0
    %225 = vmatprep.subr.mxu0 0.0
    %226 = vmatpush1.msra.mxu0 0.0
    %227 = vmatprep.subr.mxu0 0.0
    %228 = vmatpush1.msra.mxu0 0.0
    %229 = vmatprep.subr.mxu0 0.0
    %230 = vmatpush1.msra.mxu0 0.0
    %231 = vmatprep.subr.mxu0 0.0
    %232 = vmatpush1.msra.mxu0 0.0
    %233 = vmatprep.subr.mxu0 0.0
    %234 = vmatpush1.msra.mxu0 0.0
    %235 = vmatprep.subr.mxu0 0.0
    %236 = vmatpush1.msra.mxu0 0.0
    %237 = vmatprep.subr.mxu0 0.0
    %238 = vmatpush1.msra.mxu0 0.0
    %239 = vmatprep.subr.mxu0 0.0
    %240 = vmatpush1.msra.mxu0 0.0
    %241 = vmatprep.subr.mxu0 0.0
    %242 = vmatpush1.msra.mxu0 0.0
    %243 = vmatprep.subr.mxu0 0.0
    %244 = vmatpush1.msra.mxu0 0.0
    %245 = vmatprep.subr.mxu0 0.0
    %246 = vmatpush1.msra.mxu0 0.0
    %247 = vmatprep.subr.mxu0 0.0
    %248 = vmatpush1.msra.mxu0 0.0
    %249 = vmatprep.subr.mxu0 0.0
    %250 = vmatpush1.msra.mxu0 0.0
    %251 = vmatprep.mubr.f32.mxu0 0.0
    %252 = vmatmul.mubr.f32.gmra.mrb[0].mxu0 %v162
    %v253 = vpop.f32.mrb[0].mxu0
    %v254 = vadd.f32 %v185, %v253
    %v255 = vpop.f32.mrb[0].mxu0
    %256 = vmatprep.mubr.f32.mxu0 0.0
    %257 = vmatmul.mubr.f32.gmra.mrb[0].mxu0 %v163
    %v258 = vpop.f32.mrb[0].mxu0
    %v259 = vadd.f32 %v185, %v258
    %v260 = vpop.f32.mrb[0].mxu0
    %261 = vdwg.mxu0
    %v262 = vpack.c.bf16 %v259, %v254
    %v264 = vunpack.c.l.b16 %v262
    %v265 = vunpack.c.h.b16 %v262
    %v266 = vpack.c.b16 %v264, %v264
    %v267 = vpack.c.b16 %v265, %v265
    %270 = vst [vmem:[#allocation8] sm:$0xf] %v266
    %271 = vst [vmem:[#allocation8 + $0x4] sm:$0xf] %v267
    // Predicated region
    $region34: #{tpu_custom_call.1} parent=1 // pred_check
      _
    $region35: #{tpu_custom_call.1} parent=1 // pred_check_branch
      %273 = sbr.rel (0) target = $region37
    $region36: #{tpu_custom_call.1} parent=1 // pred_region
      %s275 = ssub.s32 128, 128
      %276 = vsyncadd [#allocation4], %s275
      %s277 = sshll.u32 [#allocation8], 4
      %s278 = int_to_ptr.vmem [resolvable:$true] %s277
      %283 = dma.vmem_to_hbm [thread:$0]  %s278, 128, %s5, [#allocation4], 64, 64, 4
    $region37: #{tpu_custom_call.1} parent=1 // pred_fallthru
      _
    // Predicated region
    $region38: #{tpu_custom_call.1} parent=1 // pred_check
      _
    $region39: #{tpu_custom_call.1} parent=1 // pred_check_branch
      %285 = sbr.rel (0) target = $region41
    $region40: #{tpu_custom_call.1} parent=1 // pred_region
      %286 = dma.done [#allocation4], 128
    $region41: #{tpu_custom_call.1} parent=1 // pred_fallthru
      _
    %287 = vsyncpa [#allocation3], 1
    %288 = vsyncpa [#allocation6], 1
    %289 = vsyncpa [#allocation4], 1

</llo_original>
